<compile_context>
chip_gen: v7x
topology: tpu7x:2x2x1
jax: 0.10.0
libtpu: 0.0.40
codegen_flags: <defaults>
</compile_context>

<pallas_src>
import functools

import jax
import jax.numpy as jnp
from jax.experimental import pallas as pl
from jax.experimental.pallas import tpu as pltpu

EPSILON = 1e-7
NORM_MEAN = (0.557, 0.5435, 0.5305)
NORM_VAR = (0.2727, 0.2702, 0.2787)  # module's Normalize divides by these values
LANE = 128


# ---------------------------------------------------------------------------
# Fused kernel: tanh mask/pattern -> per-channel normalize -> blend -> matmul
# ---------------------------------------------------------------------------
def _fused_kernel(mask_ref, pat_ref, x_ref, w_ref, b_ref, o_ref, *, C, HW):
    # mask_ref: (1, D)   mask_tanh pre-tiled across channels (D = C*HW)
    # pat_ref:  (1, D)   pattern_tanh, channel-major flat
    # x_ref:    (TB, D)  batch tile of the input, channel-major flat
    # w_ref:    (D, Lp)  classifier weight, labels padded to a multiple of 128
    # b_ref:    (1, Lp)  classifier bias (padded)
    # o_ref:    (TB, Lp) logits tile
    inv_denom = 1.0 / (2.0 + EPSILON)

    mask = jnp.tanh(mask_ref[...]) * inv_denom + 0.5        # (1, D)
    pattern = jnp.tanh(pat_ref[...]) * inv_denom + 0.5      # (1, D)

    # Per-channel Normalize with baked constants (multiplies, no divides).
    # HW is a multiple of 128, so these static slices stay lane-aligned.
    segs = []
    for c in range(C):
        seg = pattern[:, c * HW:(c + 1) * HW]
        segs.append((seg - NORM_MEAN[c]) * (1.0 / NORM_VAR[c]))
    pattern = jnp.concatenate(segs, axis=1)                 # (1, D)

    a = 1.0 - mask                                          # (1, D)
    b = mask * pattern                                      # (1, D)

    blended = x_ref[...] * a + b                            # (TB, D), one FMA
    o_ref[...] = (
        jnp.dot(blended, w_ref[...], preferred_element_type=jnp.float32)
        + b_ref[...]
    )


# ---------------------------------------------------------------------------
# Wrapper: layout plumbing + single pallas_call
# ---------------------------------------------------------------------------
def regression_model_forward(x, params, *, batch_tile=512):
    B, C, H, W = x.shape
    HW = H * W
    D = C * HW
    L = params["clf_w"].shape[1]
    Lp = ((L + LANE - 1) // LANE) * LANE

    # Lane-dense, channel-major flat layout.
    x_flat = x.reshape(B, D).astype(jnp.float32)
    mask_flat = jnp.tile(
        params["mask_tanh"].reshape(1, HW).astype(jnp.float32), (1, C)
    )                                                        # (1, D)
    pat_flat = params["pattern_tanh"].reshape(1, D).astype(jnp.float32)

    w_p = jnp.pad(params["clf_w"].astype(jnp.float32), ((0, 0), (0, Lp - L)))
    b_p = jnp.pad(params["clf_b"].astype(jnp.float32), (0, Lp - L)).reshape(1, Lp)

    # Batch grid (pad B up to a multiple of the tile if needed).
    TB = min(B, batch_tile)
    n_tiles = -(-B // TB)
    B_pad = n_tiles * TB
    if B_pad != B:
        x_flat = jnp.pad(x_flat, ((0, B_pad - B), (0, 0)))

    kernel = functools.partial(_fused_kernel, C=C, HW=HW)

    out = pl.pallas_call(
        kernel,
        out_shape=jax.ShapeDtypeStruct((B_pad, Lp), jnp.float32),
        grid_spec=pltpu.PrefetchScalarGridSpec(
            num_scalar_prefetch=0,
            grid=(n_tiles,),
            in_specs=[
                pl.BlockSpec((1, D), lambda i: (0, 0)),      # mask (replicated)
                pl.BlockSpec((1, D), lambda i: (0, 0)),      # pattern (replicated)
                pl.BlockSpec((TB, D), lambda i: (i, 0)),     # x batch tile
                pl.BlockSpec((D, Lp), lambda i: (0, 0)),     # classifier weight
                pl.BlockSpec((1, Lp), lambda i: (0, 0)),     # classifier bias
            ],
            out_specs=pl.BlockSpec((TB, Lp), lambda i: (i, 0)),
        ),
        compiler_params=pltpu.CompilerParams(
            dimension_semantics=("parallel",),
        ),
    )(mask_flat, pat_flat, x_flat, w_p, b_p)

    return out[:B, :L]


# ---------------------------------------------------------------------------
# Pure-JAX reference for a sanity check
# ---------------------------------------------------------------------------
def _reference_forward(x, params):
    denom = 2.0 + EPSILON
    mask = jnp.tanh(params["mask_tanh"]) / denom + 0.5            # (1, H, W)
    pattern = jnp.tanh(params["pattern_tanh"]) / denom + 0.5      # (C, H, W)
    mean = jnp.asarray(NORM_MEAN, jnp.float32)[:, None, None]
    var = jnp.asarray(NORM_VAR, jnp.float32)[:, None, None]
    pattern = (pattern - mean) / var
    blended = (1.0 - mask)[None] * x + mask[None] * pattern[None]
    B = x.shape[0]
    return blended.reshape(B, -1) @ params["clf_w"] + params["clf_b"]


if __name__ == "__main__":
    B, C, H, W = 2, 3, 16, 16     # 3 channels: Normalize constants are 3-channel
    NUM_LABELS = 10

    key = jax.random.PRNGKey(0)
    k_x, k_mask, k_pat, k_w, k_b = jax.random.split(key, 5)

    x = jax.random.uniform(k_x, (B, C, H, W), dtype=jnp.float32)
    params = {
        "mask_tanh": jax.random.normal(k_mask, (1, H, W), dtype=jnp.float32) * 0.5,
        "pattern_tanh": jax.random.normal(k_pat, (C, H, W), dtype=jnp.float32) * 0.5,
        "clf_w": jax.random.normal(k_w, (C * H * W, NUM_LABELS), dtype=jnp.float32) * 0.02,
        "clf_b": jax.random.normal(k_b, (NUM_LABELS,), dtype=jnp.float32) * 0.01,
    }

    out = regression_model_forward(x, params)
    out = jax.block_until_ready(out)

    ref = _reference_forward(x, params)
    assert out.shape == (B, NUM_LABELS)
    assert jnp.allclose(out, ref, atol=2e-4, rtol=2e-4), "mismatch vs reference"

    print("KERNEL_OK")
</pallas_src>

<mosaic_0001>
module attributes {stable_mosaic.version = 11 : i64} {
  func.func @_fused_kernel(%arg0: i32, %arg1: memref<1x768xf32, #tpu.memory_space<vmem>>, %arg2: memref<1x768xf32, #tpu.memory_space<vmem>>, %arg3: memref<2x768xf32, #tpu.memory_space<vmem>>, %arg4: memref<768x128xf32, #tpu.memory_space<vmem>>, %arg5: memref<1x128xf32, #tpu.memory_space<vmem>>, %arg6: memref<2x128xf32, #tpu.memory_space<vmem>>) attributes {dimension_semantics = [#tpu.dimension_semantics<parallel>], iteration_bounds = array<i64: 1>, scalar_prefetch = 0 : i64, scratch_operands = 0 : i64, tpu.core_type = #tpu.core_type<tc>, window_params = [{pipeline_mode = #tpu.pipeline_mode<synchronous>, transform_indices = @transform_0, window_bounds = array<i64: 1, 768>}, {pipeline_mode = #tpu.pipeline_mode<synchronous>, transform_indices = @transform_1, window_bounds = array<i64: 1, 768>}, {transform_indices = @transform_2, window_bounds = array<i64: 2, 768>}, {pipeline_mode = #tpu.pipeline_mode<synchronous>, transform_indices = @transform_3, window_bounds = array<i64: 768, 128>}, {pipeline_mode = #tpu.pipeline_mode<synchronous>, transform_indices = @transform_4, window_bounds = array<i64: 1, 128>}, {transform_indices = @transform_5, window_bounds = array<i64: 2, 128>}]} {
    %c0 = arith.constant 0 : index
    %c0_0 = arith.constant 0 : index
    %0 = vector.load %arg1[%c0, %c0_0] : memref<1x768xf32, #tpu.memory_space<vmem>>, vector<1x768xf32>
    %1 = math.tanh %0 : vector<1x768xf32>
    %cst = arith.constant 0.49999997 : f32
    %2 = vector.broadcast %cst : f32 to vector<1x768xf32>
    %3 = arith.mulf %1, %2 : vector<1x768xf32>
    %cst_1 = arith.constant 5.000000e-01 : f32
    %4 = vector.broadcast %cst_1 : f32 to vector<1x768xf32>
    %5 = arith.addf %3, %4 : vector<1x768xf32>
    %c0_2 = arith.constant 0 : index
    %c0_3 = arith.constant 0 : index
    %6 = vector.load %arg2[%c0_2, %c0_3] : memref<1x768xf32, #tpu.memory_space<vmem>>, vector<1x768xf32>
    %7 = math.tanh %6 : vector<1x768xf32>
    %cst_4 = arith.constant 0.49999997 : f32
    %8 = vector.broadcast %cst_4 : f32 to vector<1x768xf32>
    %9 = arith.mulf %7, %8 : vector<1x768xf32>
    %cst_5 = arith.constant 5.000000e-01 : f32
    %10 = vector.broadcast %cst_5 : f32 to vector<1x768xf32>
    %11 = arith.addf %9, %10 : vector<1x768xf32>
    %12 = vector.extract_strided_slice %11 {offsets = [0, 0], sizes = [1, 256], strides = [1, 1]} : vector<1x768xf32> to vector<1x256xf32>
    %cst_6 = arith.constant 5.570000e-01 : f32
    %13 = vector.broadcast %cst_6 : f32 to vector<1x256xf32>
    %14 = arith.subf %12, %13 : vector<1x256xf32>
    %cst_7 = arith.constant 3.66703343 : f32
    %15 = vector.broadcast %cst_7 : f32 to vector<1x256xf32>
    %16 = arith.mulf %14, %15 : vector<1x256xf32>
    %17 = vector.extract_strided_slice %11 {offsets = [0, 256], sizes = [1, 256], strides = [1, 1]} : vector<1x768xf32> to vector<1x256xf32>
    %cst_8 = arith.constant 5.435000e-01 : f32
    %18 = vector.broadcast %cst_8 : f32 to vector<1x256xf32>
    %19 = arith.subf %17, %18 : vector<1x256xf32>
    %cst_9 = arith.constant 3.70096231 : f32
    %20 = vector.broadcast %cst_9 : f32 to vector<1x256xf32>
    %21 = arith.mulf %19, %20 : vector<1x256xf32>
    %22 = vector.extract_strided_slice %11 {offsets = [0, 512], sizes = [1, 256], strides = [1, 1]} : vector<1x768xf32> to vector<1x256xf32>
    %cst_10 = arith.constant 5.305000e-01 : f32
    %23 = vector.broadcast %cst_10 : f32 to vector<1x256xf32>
    %24 = arith.subf %22, %23 : vector<1x256xf32>
    %cst_11 = arith.constant 3.58808756 : f32
    %25 = vector.broadcast %cst_11 : f32 to vector<1x256xf32>
    %26 = arith.mulf %24, %25 : vector<1x256xf32>
    %27 = tpu.concatenate %16, %21, %26 in 1 : vector<1x256xf32>, vector<1x256xf32>, vector<1x256xf32> -> vector<1x768xf32>
    %cst_12 = arith.constant 1.000000e+00 : f32
    %28 = vector.broadcast %cst_12 : f32 to vector<1x768xf32>
    %29 = arith.subf %28, %5 : vector<1x768xf32>
    %30 = arith.mulf %5, %27 : vector<1x768xf32>
    %c0_13 = arith.constant 0 : index
    %c0_14 = arith.constant 0 : index
    %31 = vector.load %arg3[%c0_13, %c0_14] : memref<2x768xf32, #tpu.memory_space<vmem>>, vector<2x768xf32>
    %32 = vector.broadcast %29 : vector<1x768xf32> to vector<2x768xf32>
    %33 = arith.mulf %31, %32 : vector<2x768xf32>
    %34 = vector.broadcast %30 : vector<1x768xf32> to vector<2x768xf32>
    %35 = arith.addf %33, %34 : vector<2x768xf32>
    %c0_15 = arith.constant 0 : index
    %c0_16 = arith.constant 0 : index
    %36 = vector.load %arg4[%c0_15, %c0_16] : memref<768x128xf32, #tpu.memory_space<vmem>>, vector<768x128xf32>
    %cst_17 = arith.constant dense<0.000000e+00> : vector<2x128xf32>
    %37 = tpu.matmul %35, %36, %cst_17 {dimension_numbers = #tpu.dot_dimension_numbers<[1], [0], [0], [1], [0, 0, 1, 1], [], []>} : vector<2x768xf32>, vector<768x128xf32>, vector<2x128xf32> -> vector<2x128xf32>
    %c0_18 = arith.constant 0 : index
    %c0_19 = arith.constant 0 : index
    %38 = vector.load %arg5[%c0_18, %c0_19] : memref<1x128xf32, #tpu.memory_space<vmem>>, vector<1x128xf32>
    %39 = vector.broadcast %38 : vector<1x128xf32> to vector<2x128xf32>
    %40 = arith.addf %37, %39 : vector<2x128xf32>
    %c0_20 = arith.constant 0 : index
    %c0_21 = arith.constant 0 : index
    %41 = vector.load %arg6[%c0_20, %c0_21] : memref<2x128xf32, #tpu.memory_space<vmem>>, vector<2x128xf32>
    tpu.vector_store %arg6[%c0_20, %c0_21], %40 {strides = array<i32>} : memref<2x128xf32, #tpu.memory_space<vmem>>, vector<2x128xf32>,
    return
  }
  func.func @transform_0(%arg0: i32) -> (i32, i32) {
    %c0_i32 = arith.constant 0 : i32
    %c0_i32_0 = arith.constant 0 : i32
    %c0_i32_1 = arith.constant 0 : i32
    return %c0_i32, %c0_i32_0 : i32, i32
  }
  func.func @transform_1(%arg0: i32) -> (i32, i32) {
    %c0_i32 = arith.constant 0 : i32
    %c0_i32_0 = arith.constant 0 : i32
    %c0_i32_1 = arith.constant 0 : i32
    return %c0_i32, %c0_i32_0 : i32, i32
  }
  func.func @transform_2(%arg0: i32) -> (i32, i32) {
    %c0_i32 = arith.constant 0 : i32
    %c0_i32_0 = arith.constant 0 : i32
    return %arg0, %c0_i32 : i32, i32
  }
  func.func @transform_3(%arg0: i32) -> (i32, i32) {
    %c0_i32 = arith.constant 0 : i32
    %c0_i32_0 = arith.constant 0 : i32
    %c0_i32_1 = arith.constant 0 : i32
    return %c0_i32, %c0_i32_0 : i32, i32
  }
  func.func @transform_4(%arg0: i32) -> (i32, i32) {
    %c0_i32 = arith.constant 0 : i32
    %c0_i32_0 = arith.constant 0 : i32
    %c0_i32_1 = arith.constant 0 : i32
    return %c0_i32, %c0_i32_0 : i32, i32
  }
  func.func @transform_5(%arg0: i32) -> (i32, i32) {
    %c0_i32 = arith.constant 0 : i32
    %c0_i32_0 = arith.constant 0 : i32
    return %arg0, %c0_i32 : i32, i32
  }
}

</mosaic_0001>

<llo_original>
// kernel: tpu_custom_call.1
$region0: #{tpu_custom_call.1}
  #allocation0 [shape = 'u32[]', space=smem, size = 0x4, offset = 0x4, fixed_abs, tag = 'smem constant byte address 0x4 - core index']
  #allocation1 [shape = 'u32[144,128]{1,0:T(1,128)}', space=vmem, size = 0x12000, scoped, tag = 'internal scratch']
  %s0 = inlined_call_operand.hbm [shape: f32[1,768], index: 0, kind: input, shape index: {}]
  %s1 = inlined_call_operand.hbm [shape: f32[1,768], index: 1, kind: input, shape index: {}]
  %s2 = inlined_call_operand.hbm [shape: f32[2,768], index: 2, kind: input, shape index: {}]
  %s3 = inlined_call_operand.hbm [shape: f32[768,128], index: 3, kind: input, shape index: {}]
  %s4 = inlined_call_operand.vmem [shape: f32[1,128], index: 4, kind: input, shape index: {}]
  %s5 = inlined_call_operand.hbm [shape: f32[2,128], index: 5, kind: output, shape index: {}]
  %s6 = sld [smem:[#allocation0]]
  $region46: #{tpu_custom_call.1} parent=0
    _
  %s8 = ssub.s32 1, %s6
  %s9 = scalar_select 0, %s8, %s6
  $region1: #{tpu_custom_call.1} parent=0
    #allocation2 [shape = 'u8[3072]{0}', space=vmem, size = 0xc00, scoped, tag = 'input window, operand 0, single buffered']
    #allocation3 [shape = 's32[1]{0}', space=sflag, size = 0x4, scoped, tag = 'scoped memory for tpu_custom_call.1']
    #allocation4 [shape = 's32[1]{0}', space=sflag, size = 0x4, scoped, tag = 'scoped memory for tpu_custom_call.1']
    #allocation5 [shape = 'u8[3072]{0}', space=vmem, size = 0xc00, scoped, tag = 'input window, operand 1, single buffered']
    #allocation6 [shape = 's32[1]{0}', space=sflag, size = 0x4, scoped, tag = 'scoped memory for tpu_custom_call.1']
    #allocation7 [shape = 'u8[6144]{0}', space=vmem, size = 0x1800, scoped, tag = 'input window, operand 2, single buffered']
    #allocation8 [shape = 'u8[393216]{0}', space=vmem, size = 0x60000, scoped, tag = 'input window, operand 3, single buffered']
    #allocation9 [shape = 's32[1]{0}', space=sflag, size = 0x4, scoped, tag = 'scoped memory for tpu_custom_call.1']
    #allocation10 [shape = 'u8[1024]{0}', space=vmem, size = 0x400, scoped, tag = 'output window, operand 0, single buffered']
    %10 = vsyncpa [#allocation3], 0
    %11 = vsyncpa [#allocation6], 0
    %12 = vsyncpa [#allocation9], 0
    %13 = vsyncpa [#allocation4], 0
    // Predicated region
    $region2: #{tpu_custom_call.1} parent=1 // pred_check
      _
    $region3: #{tpu_custom_call.1} parent=1 // pred_check_branch
      %15 = sbr.rel (0) target = $region5
    $region4: #{tpu_custom_call.1} parent=1 // pred_region
      %s17 = ssub.s32 96, 96
      %18 = vsyncadd [#allocation3], %s17
      %s20 = sshll.u32 [#allocation2], 4
      %s21 = int_to_ptr.vmem [resolvable:$true] %s20
      %23 = dma.hbm_to_vmem [thread:$0]  %s0, 96, %s21, [#allocation3]
    $region5: #{tpu_custom_call.1} parent=1 // pred_fallthru
      _
    // Predicated region
    $region6: #{tpu_custom_call.1} parent=1 // pred_check
      _
    $region7: #{tpu_custom_call.1} parent=1 // pred_check_branch
      %25 = sbr.rel (0) target = $region9
    $region8: #{tpu_custom_call.1} parent=1 // pred_region
      %s27 = ssub.s32 96, 96
      %28 = vsyncadd [#allocation6], %s27
      %s30 = sshll.u32 [#allocation5], 4
      %s31 = int_to_ptr.vmem [resolvable:$true] %s30
      %33 = dma.hbm_to_vmem [thread:$0]  %s1, 96, %s31, [#allocation6]
    $region9: #{tpu_custom_call.1} parent=1 // pred_fallthru
      _
    // Predicated region
    $region10: #{tpu_custom_call.1} parent=1 // pred_check
      _
    $region11: #{tpu_custom_call.1} parent=1 // pred_check_branch
      %35 = sbr.rel (0) target = $region13
    $region12: #{tpu_custom_call.1} parent=1 // pred_region
      %s37 = ssub.s32 192, 192
      %38 = vsyncadd [#allocation6], %s37
      %s40 = sshll.u32 [#allocation7], 4
      %s41 = int_to_ptr.vmem [resolvable:$true] %s40
      %43 = dma.hbm_to_vmem [thread:$0]  %s2, 192, %s41, [#allocation6]
    $region13: #{tpu_custom_call.1} parent=1 // pred_fallthru
      _
    // Predicated region
    $region14: #{tpu_custom_call.1} parent=1 // pred_check
      _
    $region15: #{tpu_custom_call.1} parent=1 // pred_check_branch
      %45 = sbr.rel (0) target = $region17
    $region16: #{tpu_custom_call.1} parent=1 // pred_region
      %s47 = ssub.s32 12288, 12288
      %48 = vsyncadd [#allocation9], %s47
      %s49 = sshll.u32 [#allocation8], 4
      %s50 = int_to_ptr.vmem [resolvable:$true] %s49
      %55 = dma.hbm_to_vmem [thread:$0]  %s3, 12288, %s50, [#allocation9], 128, 128, 8
    $region17: #{tpu_custom_call.1} parent=1 // pred_fallthru
      _
    // Predicated region
    $region18: #{tpu_custom_call.1} parent=1 // pred_check
      _
    $region19: #{tpu_custom_call.1} parent=1 // pred_check_branch
      %57 = sbr.rel (0) target = $region21
    $region20: #{tpu_custom_call.1} parent=1 // pred_region
      _
    $region21: #{tpu_custom_call.1} parent=1 // pred_fallthru
      _
    // Predicated region
    $region22: #{tpu_custom_call.1} parent=1 // pred_check
      _
    $region23: #{tpu_custom_call.1} parent=1 // pred_check_branch
      %59 = sbr.rel (0) target = $region25
    $region24: #{tpu_custom_call.1} parent=1 // pred_region
      %60 = dma.done [#allocation3], 96
    $region25: #{tpu_custom_call.1} parent=1 // pred_fallthru
      _
    // Predicated region
    $region26: #{tpu_custom_call.1} parent=1 // pred_check
      _
    $region27: #{tpu_custom_call.1} parent=1 // pred_check_branch
      %62 = sbr.rel (0) target = $region29
    $region28: #{tpu_custom_call.1} parent=1 // pred_region
      %63 = dma.done [#allocation6], 96
    $region29: #{tpu_custom_call.1} parent=1 // pred_fallthru
      _
    // Predicated region
    $region30: #{tpu_custom_call.1} parent=1 // pred_check
      _
    $region31: #{tpu_custom_call.1} parent=1 // pred_check_branch
      %65 = sbr.rel (0) target = $region33
    $region32: #{tpu_custom_call.1} parent=1 // pred_region
      %66 = dma.done [#allocation6], 192
    $region33: #{tpu_custom_call.1} parent=1 // pred_fallthru
      _
    // Predicated region
    $region34: #{tpu_custom_call.1} parent=1 // pred_check
      _
    $region35: #{tpu_custom_call.1} parent=1 // pred_check_branch
      %68 = sbr.rel (0) target = $region37
    $region36: #{tpu_custom_call.1} parent=1 // pred_region
      %69 = dma.done [#allocation9], 12288
    $region37: #{tpu_custom_call.1} parent=1 // pred_fallthru
      _
    %v70 = vld [vmem:[#allocation2] sm:$0x3f]
    %v71 = vtanh.pop %v70
    %v72 = vmul.f32 %v71, 0.49999997
    %v73 = vadd.f32 %v72, 0.5
    %v74 = vld [vmem:[#allocation5] sm:$0x3f]
    %v75 = vtanh.pop %v74
    %v76 = vmul.f32 %v75, 0.49999997
    %v77 = vadd.f32 %v76, 0.5
    %v78 = vsub.f32 %v77, 0.557
    %v79 = vmul.f32 %v78, 3.6670334
    %v81 = vrot.slane %v77, 2
    %v83 = vsub.f32 %v81, 0.5435
    %v84 = vmul.f32 %v83, 3.7009623
    %v85 = vrot.slane %v77, 4
    %v87 = vsub.f32 %v85, 0.5305
    %v88 = vmul.f32 %v87, 3.5880876
    %v90 = vlaneseq
    %v91 = vshrl.u32 %v90, 7
    %v92 = vsub.s32 0, %v91
    %v93 = vrot.slane %v79, %v92
    %v94 = vlaneseq
    %v95 = vshrl.u32 %v94, 7
    %v96 = vsub.s32 1, %v95
    %v97 = vrot.slane %v79, %v96
    %v99 = vlaneseq
    %v100 = vshrl.u32 %v99, 7
    %v101 = vsub.s32 0, %v100
    %v102 = vrot.slane %v84, %v101
    %v103 = vlaneseq
    %v104 = vshrl.u32 %v103, 7
    %v105 = vsub.s32 1, %v104
    %v106 = vrot.slane %v84, %v105
    %v108 = vlaneseq
    %v109 = vshrl.u32 %v108, 7
    %v110 = vsub.s32 0, %v109
    %v111 = vrot.slane %v88, %v110
    %v112 = vlaneseq
    %v113 = vshrl.u32 %v112, 7
    %v114 = vsub.s32 1, %v113
    %v115 = vrot.slane %v88, %v114
    %v116 = vsub.f32 1.0, %v73
    %v117 = vcombine.low %v93, %v97
    %v118 = vcombine.low %v102, %v106
    %v119 = vcombine.low %v111, %v115
    %v121 = vunpack.c.l.s4 1966171168
    %v122 = vunpack.c.0.s8 %v121
    %v123 = vlaneseq
    %v124 = vshrl.u32 %v123, 7
    %v125 = vsub.s32 %v122, %v124
    %v126 = vrot.slane %v117, %v125
    %v128 = vunpack.c.l.s4 1966171168
    %v129 = vunpack.c.0.s8 %v128
    %v130 = vlaneseq
    %v131 = vshrl.u32 %v130, 7
    %v132 = vsub.s32 %v129, %v131
    %v133 = vrot.slane %v118, %v132
    %v135 = vunpack.c.l.s4 1966171168
    %v136 = vunpack.c.0.s8 %v135
    %v137 = vlaneseq
    %v138 = vshrl.u32 %v137, 7
    %v139 = vsub.s32 %v136, %v138
    %v140 = vrot.slane %v119, %v139
    %v141 = vcombine.low %v126, %v133
    %v143 = vunpack.c.l.s4 1966171168
    %v144 = vunpack.c.0.s8 %v143
    %v145 = vlaneseq
    %v146 = vshrl.u32 %v145, 7
    %v147 = vsub.s32 %v144, %v146
    %v148 = vrot.slane %v141, %v147
    %v150 = vunpack.c.l.s4 1966171168
    %v151 = vunpack.c.0.s8 %v150
    %v152 = vlaneseq
    %v153 = vshrl.u32 %v152, 7
    %v154 = vsub.s32 %v151, %v153
    %v155 = vrot.slane %v140, %v154
    %v156 = vcombine.low %v148, %v155
    %v158 = vmul.f32 %v73, %v156
    %v159 = vld [vmem:[#allocation7] sm:$0xff]
    %v160 = vld [vmem:[#allocation7 + $0x8] sm:$0xf]
    %v162 = vlaneseq
    %v163 = vshrl.u32 %v162, 7
    %v164 = vsub.s32 0, %v163
    %v165 = vrot.slane %v116, %v164
    %v166 = vlaneseq
    %v167 = vshrl.u32 %v166, 7
    %v168 = vsub.s32 1, %v167
    %v169 = vrot.slane %v116, %v168
    %v170 = vlaneseq
    %v171 = vshrl.u32 %v170, 7
    %v172 = vsub.s32 2, %v171
    %v173 = vrot.slane %v116, %v172
    %v174 = vlaneseq
    %v175 = vshrl.u32 %v174, 7
    %v176 = vsub.s32 3, %v175
    %v177 = vrot.slane %v116, %v176
    %v178 = vlaneseq
    %v179 = vshrl.u32 %v178, 7
    %v180 = vsub.s32 4, %v179
    %v181 = vrot.slane %v116, %v180
    %v182 = vlaneseq
    %v183 = vshrl.u32 %v182, 7
    %v184 = vsub.s32 5, %v183
    %v185 = vrot.slane %v116, %v184
    %v186 = vcombine.low %v165, %v169
    %v187 = vcombine.low %v173, %v177
    %v189 = vunpack.c.l.s4 1983009808
    %v190 = vunpack.c.0.s8 %v189
    %v191 = vlaneseq
    %v192 = vshrl.u32 %v191, 7
    %v193 = vsub.s32 %v190, %v192
    %v194 = vrot.slane %v186, %v193
    %v196 = vunpack.c.l.s4 1983009808
    %v197 = vunpack.c.0.s8 %v196
    %v198 = vlaneseq
    %v199 = vshrl.u32 %v198, 7
    %v200 = vsub.s32 %v197, %v199
    %v201 = vrot.slane %v187, %v200
    %v202 = vcombine.low %v194, %v201
    %v203 = vcombine.low %v181, %v185
    %v205 = vunpack.c.l.s4 1983009808
    %v206 = vunpack.c.0.s8 %v205
    %v207 = vlaneseq
    %v208 = vshrl.u32 %v207, 7
    %v209 = vsub.s32 %v206, %v208
    %v210 = vrot.slane %v203, %v209
    %v213 = vmul.f32 %v159, %v202
    %v214 = vmul.f32 %v160, %v210
    %v216 = vlaneseq
    %v217 = vshrl.u32 %v216, 7
    %v218 = vsub.s32 0, %v217
    %v219 = vrot.slane %v158, %v218
    %v220 = vlaneseq
    %v221 = vshrl.u32 %v220, 7
    %v222 = vsub.s32 1, %v221
    %v223 = vrot.slane %v158, %v222
    %v224 = vlaneseq
    %v225 = vshrl.u32 %v224, 7
    %v226 = vsub.s32 2, %v225
    %v227 = vrot.slane %v158, %v226
    %v228 = vlaneseq
    %v229 = vshrl.u32 %v228, 7
    %v230 = vsub.s32 3, %v229
    %v231 = vrot.slane %v158, %v230
    %v232 = vlaneseq
    %v233 = vshrl.u32 %v232, 7
    %v234 = vsub.s32 4, %v233
    %v235 = vrot.slane %v158, %v234
    %v236 = vlaneseq
    %v237 = vshrl.u32 %v236, 7
    %v238 = vsub.s32 5, %v237
    %v239 = vrot.slane %v158, %v238
    %v240 = vcombine.low %v219, %v223
    %v241 = vcombine.low %v227, %v231
    %v243 = vunpack.c.l.s4 1983009808
    %v244 = vunpack.c.0.s8 %v243
    %v245 = vlaneseq
    %v246 = vshrl.u32 %v245, 7
    %v247 = vsub.s32 %v244, %v246
    %v248 = vrot.slane %v240, %v247
    %v250 = vunpack.c.l.s4 1983009808
    %v251 = vunpack.c.0.s8 %v250
    %v252 = vlaneseq
    %v253 = vshrl.u32 %v252, 7
    %v254 = vsub.s32 %v251, %v253
    %v255 = vrot.slane %v241, %v254
    %v256 = vcombine.low %v248, %v255
    %v257 = vcombine.low %v235, %v239
    %v259 = vunpack.c.l.s4 1983009808
    %v260 = vunpack.c.0.s8 %v259
    %v261 = vlaneseq
    %v262 = vshrl.u32 %v261, 7
    %v263 = vsub.s32 %v260, %v262
    %v264 = vrot.slane %v257, %v263
    %v267 = vadd.f32 %v213, %v256
    %v268 = vadd.f32 %v214, %v264
    %v269 = vld [vmem:[#allocation8] sm:$0xff]
    %v270 = vld [vmem:[#allocation8 + $0x8] sm:$0xff]
    %v271 = vld [vmem:[#allocation8 + $0x10] sm:$0xff]
    %v272 = vld [vmem:[#allocation8 + $0x18] sm:$0xff]
    %v273 = vld [vmem:[#allocation8 + $0x20] sm:$0xff]
    %v274 = vld [vmem:[#allocation8 + $0x28] sm:$0xff]
    %v275 = vld [vmem:[#allocation8 + $0x30] sm:$0xff]
    %v276 = vld [vmem:[#allocation8 + $0x38] sm:$0xff]
    %v277 = vld [vmem:[#allocation8 + $0x40] sm:$0xff]
    %v278 = vld [vmem:[#allocation8 + $0x48] sm:$0xff]
    %v279 = vld [vmem:[#allocation8 + $0x50] sm:$0xff]
    %v280 = vld [vmem:[#allocation8 + $0x58] sm:$0xff]
    %v281 = vld [vmem:[#allocation8 + $0x60] sm:$0xff]
    %v282 = vld [vmem:[#allocation8 + $0x68] sm:$0xff]
    %v283 = vld [vmem:[#allocation8 + $0x70] sm:$0xff]
    %v284 = vld [vmem:[#allocation8 + $0x78] sm:$0xff]
    %v285 = vld [vmem:[#allocation8 + $0x80] sm:$0xff]
    %v286 = vld [vmem:[#allocation8 + $0x88] sm:$0xff]
    %v287 = vld [vmem:[#allocation8 + $0x90] sm:$0xff]
    %v288 = vld [vmem:[#allocation8 + $0x98] sm:$0xff]
    %v289 = vld [vmem:[#allocation8 + $0xa0] sm:$0xff]
    %v290 = vld [vmem:[#allocation8 + $0xa8] sm:$0xff]
    %v291 = vld [vmem:[#allocation8 + $0xb0] sm:$0xff]
    %v292 = vld [vmem:[#allocation8 + $0xb8] sm:$0xff]
    %v293 = vld [vmem:[#allocation8 + $0xc0] sm:$0xff]
    %v294 = vld [vmem:[#allocation8 + $0xc8] sm:$0xff]
    %v295 = vld [vmem:[#allocation8 + $0xd0] sm:$0xff]
    %v296 = vld [vmem:[#allocation8 + $0xd8] sm:$0xff]
    %v297 = vld [vmem:[#allocation8 + $0xe0] sm:$0xff]
    %v298 = vld [vmem:[#allocation8 + $0xe8] sm:$0xff]
    %v299 = vld [vmem:[#allocation8 + $0xf0] sm:$0xff]
    %v300 = vld [vmem:[#allocation8 + $0xf8] sm:$0xff]
    %v301 = vld [vmem:[#allocation8 + $0x100] sm:$0xff]
    %v302 = vld [vmem:[#allocation8 + $0x108] sm:$0xff]
    %v303 = vld [vmem:[#allocation8 + $0x110] sm:$0xff]
    %v304 = vld [vmem:[#allocation8 + $0x118] sm:$0xff]
    %v305 = vld [vmem:[#allocation8 + $0x120] sm:$0xff]
    %v306 = vld [vmem:[#allocation8 + $0x128] sm:$0xff]
    %v307 = vld [vmem:[#allocation8 + $0x130] sm:$0xff]
    %v308 = vld [vmem:[#allocation8 + $0x138] sm:$0xff]
    %v309 = vld [vmem:[#allocation8 + $0x140] sm:$0xff]
    %v310 = vld [vmem:[#allocation8 + $0x148] sm:$0xff]
    %v311 = vld [vmem:[#allocation8 + $0x150] sm:$0xff]
    %v312 = vld [vmem:[#allocation8 + $0x158] sm:$0xff]
    %v313 = vld [vmem:[#allocation8 + $0x160] sm:$0xff]
    %v314 = vld [vmem:[#allocation8 + $0x168] sm:$0xff]
    %v315 = vld [vmem:[#allocation8 + $0x170] sm:$0xff]
    %v316 = vld [vmem:[#allocation8 + $0x178] sm:$0xff]
    %v317 = vld [vmem:[#allocation8 + $0x180] sm:$0xff]
    %v318 = vld [vmem:[#allocation8 + $0x188] sm:$0xff]
    %v319 = vld [vmem:[#allocation8 + $0x190] sm:$0xff]
    %v320 = vld [vmem:[#allocation8 + $0x198] sm:$0xff]
    %v321 = vld [vmem:[#allocation8 + $0x1a0] sm:$0xff]
    %v322 = vld [vmem:[#allocation8 + $0x1a8] sm:$0xff]
    %v323 = vld [vmem:[#allocation8 + $0x1b0] sm:$0xff]
    %v324 = vld [vmem:[#allocation8 + $0x1b8] sm:$0xff]
    %v325 = vld [vmem:[#allocation8 + $0x1c0] sm:$0xff]
    %v326 = vld [vmem:[#allocation8 + $0x1c8] sm:$0xff]
    %v327 = vld [vmem:[#allocation8 + $0x1d0] sm:$0xff]
    %v328 = vld [vmem:[#allocation8 + $0x1d8] sm:$0xff]
    %v329 = vld [vmem:[#allocation8 + $0x1e0] sm:$0xff]
    %v330 = vld [vmem:[#allocation8 + $0x1e8] sm:$0xff]
    %v331 = vld [vmem:[#allocation8 + $0x1f0] sm:$0xff]
    %v332 = vld [vmem:[#allocation8 + $0x1f8] sm:$0xff]
    %v333 = vld [vmem:[#allocation8 + $0x200] sm:$0xff]
    %v334 = vld [vmem:[#allocation8 + $0x208] sm:$0xff]
    %v335 = vld [vmem:[#allocation8 + $0x210] sm:$0xff]
    %v336 = vld [vmem:[#allocation8 + $0x218] sm:$0xff]
    %v337 = vld [vmem:[#allocation8 + $0x220] sm:$0xff]
    %v338 = vld [vmem:[#allocation8 + $0x228] sm:$0xff]
    %v339 = vld [vmem:[#allocation8 + $0x230] sm:$0xff]
    %v340 = vld [vmem:[#allocation8 + $0x238] sm:$0xff]
    %v341 = vld [vmem:[#allocation8 + $0x240] sm:$0xff]
    %v342 = vld [vmem:[#allocation8 + $0x248] sm:$0xff]
    %v343 = vld [vmem:[#allocation8 + $0x250] sm:$0xff]
    %v344 = vld [vmem:[#allocation8 + $0x258] sm:$0xff]
    %v345 = vld [vmem:[#allocation8 + $0x260] sm:$0xff]
    %v346 = vld [vmem:[#allocation8 + $0x268] sm:$0xff]
    %v347 = vld [vmem:[#allocation8 + $0x270] sm:$0xff]
    %v348 = vld [vmem:[#allocation8 + $0x278] sm:$0xff]
    %v349 = vld [vmem:[#allocation8 + $0x280] sm:$0xff]
    %v350 = vld [vmem:[#allocation8 + $0x288] sm:$0xff]
    %v351 = vld [vmem:[#allocation8 + $0x290] sm:$0xff]
    %v352 = vld [vmem:[#allocation8 + $0x298] sm:$0xff]
    %v353 = vld [vmem:[#allocation8 + $0x2a0] sm:$0xff]
    %v354 = vld [vmem:[#allocation8 + $0x2a8] sm:$0xff]
    %v355 = vld [vmem:[#allocation8 + $0x2b0] sm:$0xff]
    %v356 = vld [vmem:[#allocation8 + $0x2b8] sm:$0xff]
    %v357 = vld [vmem:[#allocation8 + $0x2c0] sm:$0xff]
    %v358 = vld [vmem:[#allocation8 + $0x2c8] sm:$0xff]
    %v359 = vld [vmem:[#allocation8 + $0x2d0] sm:$0xff]
    %v360 = vld [vmem:[#allocation8 + $0x2d8] sm:$0xff]
    %v361 = vld [vmem:[#allocation8 + $0x2e0] sm:$0xff]
    %v362 = vld [vmem:[#allocation8 + $0x2e8] sm:$0xff]
    %v363 = vld [vmem:[#allocation8 + $0x2f0] sm:$0xff]
    %v364 = vld [vmem:[#allocation8 + $0x2f8] sm:$0xff]
    %v365 = vld [vmem:[%s4] sm:$0x1]
    %v367 = vlaneseq
    %v368 = vshrl.u32 %v367, 7
    %v369 = vsub.s32 0, %v368
    %v370 = vrot.slane %v365, %v369
    %v374 = vcombine.high %v267, %v267
    %v376 = vunpack.c.l.s4 1983009808
    %v377 = vunpack.c.0.s8 %v376
    %v378 = vlaneseq
    %v379 = vshrl.u32 %v378, 7
    %v380 = vsub.s32 %v377, %v379
    %v381 = vrot.slane %v267, %v380
    %v383 = vunpack.c.l.s4 1983009808
    %v384 = vunpack.c.0.s8 %v383
    %v385 = vlaneseq
    %v386 = vshrl.u32 %v385, 7
    %v387 = vsub.s32 %v384, %v386
    %v388 = vrot.slane %v374, %v387
    %v389 = vcombine.high %v381, %v381
    %v390 = vcombine.high %v388, %v388
    %v392 = vunpack.c.l.s4 1983009808
    %v393 = vunpack.c.0.s8 %v392
    %v394 = vlaneseq
    %v395 = vshrl.u32 %v394, 7
    %v396 = vsub.s32 %v393, %v395
    %v397 = vrot.slane %v268, %v396
    %v398 = vcombine.high %v397, %v397
    %405 = vmatprep.subr.mxu0 0.0
    %406 = vmatpush1.msra.mxu0 %v269
    %407 = vmatprep.subr.mxu0 0.0
    %408 = vmatpush1.msra.mxu0 %v270
    %409 = vmatprep.subr.mxu0 0.0
    %410 = vmatpush1.msra.mxu0 %v271
    %411 = vmatprep.subr.mxu0 0.0
    %412 = vmatpush1.msra.mxu0 %v272
    %413 = vmatprep.subr.mxu0 0.0
    %414 = vmatpush1.msra.mxu0 %v273
    %415 = vmatprep.subr.mxu0 0.0
    %416 = vmatpush1.msra.mxu0 %v274
    %417 = vmatprep.subr.mxu0 0.0
    %418 = vmatpush1.msra.mxu0 %v275
    %419 = vmatprep.subr.mxu0 0.0
    %420 = vmatpush1.msra.mxu0 %v276
    %421 = vmatprep.subr.mxu0 0.0
    %422 = vmatpush1.msra.mxu0 %v277
    %423 = vmatprep.subr.mxu0 0.0
    %424 = vmatpush1.msra.mxu0 %v278
    %425 = vmatprep.subr.mxu0 0.0
    %426 = vmatpush1.msra.mxu0 %v279
    %427 = vmatprep.subr.mxu0 0.0
    %428 = vmatpush1.msra.mxu0 %v280
    %429 = vmatprep.subr.mxu0 0.0
    %430 = vmatpush1.msra.mxu0 %v281
    %431 = vmatprep.subr.mxu0 0.0
    %432 = vmatpush1.msra.mxu0 %v282
    %433 = vmatprep.subr.mxu0 0.0
    %434 = vmatpush1.msra.mxu0 %v283
    %435 = vmatprep.subr.mxu0 0.0
    %436 = vmatpush1.msra.mxu0 %v284
    %437 = vmatprep.subr.mxu0 0.0
    %438 = vmatpush1.msra.mxu0 %v285
    %439 = vmatprep.subr.mxu0 0.0
    %440 = vmatpush1.msra.mxu0 %v286
    %441 = vmatprep.subr.mxu0 0.0
    %442 = vmatpush1.msra.mxu0 %v287
    %443 = vmatprep.subr.mxu0 0.0
    %444 = vmatpush1.msra.mxu0 %v288
    %445 = vmatprep.subr.mxu0 0.0
    %446 = vmatpush1.msra.mxu0 %v289
    %447 = vmatprep.subr.mxu0 0.0
    %448 = vmatpush1.msra.mxu0 %v290
    %449 = vmatprep.subr.mxu0 0.0
    %450 = vmatpush1.msra.mxu0 %v291
    %451 = vmatprep.subr.mxu0 0.0
    %452 = vmatpush1.msra.mxu0 %v292
    %453 = vmatprep.subr.mxu0 0.0
    %454 = vmatpush1.msra.mxu0 %v293
    %455 = vmatprep.subr.mxu0 0.0
    %456 = vmatpush1.msra.mxu0 %v294
    %457 = vmatprep.subr.mxu0 0.0
    %458 = vmatpush1.msra.mxu0 %v295
    %459 = vmatprep.subr.mxu0 0.0
    %460 = vmatpush1.msra.mxu0 %v296
    %461 = vmatprep.subr.mxu0 0.0
    %462 = vmatpush1.msra.mxu0 %v297
    %463 = vmatprep.subr.mxu0 0.0
    %464 = vmatpush1.msra.mxu0 %v298
    %465 = vmatprep.subr.mxu0 0.0
    %466 = vmatpush1.msra.mxu0 %v299
    %467 = vmatprep.subr.mxu0 0.0
    %468 = vmatpush1.msra.mxu0 %v300
    %469 = vmatprep.mubr.f32.mxu0 %v389
    %470 = vmatmul.mubr.f32.gmra.mrb[0].mxu0 %v381
    %v471 = vpop.f32.mrb[0].mxu0
    %v472 = vadd.f32 %v370, %v471
    %v473 = vpop.f32.mrb[0].mxu0
    %474 = vdwg.mxu0
    %475 = vmatprep.subr.mxu0 0.0
    %476 = vmatpush1.msra.mxu0 %v301
    %477 = vmatprep.subr.mxu0 0.0
    %478 = vmatpush1.msra.mxu0 %v302
    %479 = vmatprep.subr.mxu0 0.0
    %480 = vmatpush1.msra.mxu0 %v303
    %481 = vmatprep.subr.mxu0 0.0
    %482 = vmatpush1.msra.mxu0 %v304
    %483 = vmatprep.subr.mxu0 0.0
    %484 = vmatpush1.msra.mxu0 %v305
    %485 = vmatprep.subr.mxu0 0.0
    %486 = vmatpush1.msra.mxu0 %v306
    %487 = vmatprep.subr.mxu0 0.0
    %488 = vmatpush1.msra.mxu0 %v307
    %489 = vmatprep.subr.mxu0 0.0
    %490 = vmatpush1.msra.mxu0 %v308
    %491 = vmatprep.subr.mxu0 0.0
    %492 = vmatpush1.msra.mxu0 %v309
    %493 = vmatprep.subr.mxu0 0.0
    %494 = vmatpush1.msra.mxu0 %v310
    %495 = vmatprep.subr.mxu0 0.0
    %496 = vmatpush1.msra.mxu0 %v311
    %497 = vmatprep.subr.mxu0 0.0
    %498 = vmatpush1.msra.mxu0 %v312
    %499 = vmatprep.subr.mxu0 0.0
    %500 = vmatpush1.msra.mxu0 %v313
    %501 = vmatprep.subr.mxu0 0.0
    %502 = vmatpush1.msra.mxu0 %v314
    %503 = vmatprep.subr.mxu0 0.0
    %504 = vmatpush1.msra.mxu0 %v315
    %505 = vmatprep.subr.mxu0 0.0
    %506 = vmatpush1.msra.mxu0 %v316
    %507 = vmatprep.subr.mxu0 0.0
    %508 = vmatpush1.msra.mxu0 %v317
    %509 = vmatprep.subr.mxu0 0.0
    %510 = vmatpush1.msra.mxu0 %v318
    %511 = vmatprep.subr.mxu0 0.0
    %512 = vmatpush1.msra.mxu0 %v319
    %513 = vmatprep.subr.mxu0 0.0
    %514 = vmatpush1.msra.mxu0 %v320
    %515 = vmatprep.subr.mxu0 0.0
    %516 = vmatpush1.msra.mxu0 %v321
    %517 = vmatprep.subr.mxu0 0.0
    %518 = vmatpush1.msra.mxu0 %v322
    %519 = vmatprep.subr.mxu0 0.0
    %520 = vmatpush1.msra.mxu0 %v323
    %521 = vmatprep.subr.mxu0 0.0
    %522 = vmatpush1.msra.mxu0 %v324
    %523 = vmatprep.subr.mxu0 0.0
    %524 = vmatpush1.msra.mxu0 %v325
    %525 = vmatprep.subr.mxu0 0.0
    %526 = vmatpush1.msra.mxu0 %v326
    %527 = vmatprep.subr.mxu0 0.0
    %528 = vmatpush1.msra.mxu0 %v327
    %529 = vmatprep.subr.mxu0 0.0
    %530 = vmatpush1.msra.mxu0 %v328
    %531 = vmatprep.subr.mxu0 0.0
    %532 = vmatpush1.msra.mxu0 %v329
    %533 = vmatprep.subr.mxu0 0.0
    %534 = vmatpush1.msra.mxu0 %v330
    %535 = vmatprep.subr.mxu0 0.0
    %536 = vmatpush1.msra.mxu0 %v331
    %537 = vmatprep.subr.mxu0 0.0
    %538 = vmatpush1.msra.mxu0 %v332
    %539 = vmatprep.mubr.f32.mxu0 %v390
    %540 = vmatmul.mubr.f32.gmra.mrb[0].mxu0 %v388
    %v541 = vpop.f32.mrb[0].mxu0
    %v542 = vadd.f32 %v472, %v541
    %v543 = vpop.f32.mrb[0].mxu0
    %544 = vdwg.mxu0
    %545 = vmatprep.subr.mxu0 0.0
    %546 = vmatpush1.msra.mxu0 %v333
    %547 = vmatprep.subr.mxu0 0.0
    %548 = vmatpush1.msra.mxu0 %v334
    %549 = vmatprep.subr.mxu0 0.0
    %550 = vmatpush1.msra.mxu0 %v335
    %551 = vmatprep.subr.mxu0 0.0
    %552 = vmatpush1.msra.mxu0 %v336
    %553 = vmatprep.subr.mxu0 0.0
    %554 = vmatpush1.msra.mxu0 %v337
    %555 = vmatprep.subr.mxu0 0.0
    %556 = vmatpush1.msra.mxu0 %v338
    %557 = vmatprep.subr.mxu0 0.0
    %558 = vmatpush1.msra.mxu0 %v339
    %559 = vmatprep.subr.mxu0 0.0
    %560 = vmatpush1.msra.mxu0 %v340
    %561 = vmatprep.subr.mxu0 0.0
    %562 = vmatpush1.msra.mxu0 %v341
    %563 = vmatprep.subr.mxu0 0.0
    %564 = vmatpush1.msra.mxu0 %v342
    %565 = vmatprep.subr.mxu0 0.0
    %566 = vmatpush1.msra.mxu0 %v343
    %567 = vmatprep.subr.mxu0 0.0
    %568 = vmatpush1.msra.mxu0 %v344
    %569 = vmatprep.subr.mxu0 0.0
    %570 = vmatpush1.msra.mxu0 %v345
    %571 = vmatprep.subr.mxu0 0.0
    %572 = vmatpush1.msra.mxu0 %v346
    %573 = vmatprep.subr.mxu0 0.0
    %574 = vmatpush1.msra.mxu0 %v347
    %575 = vmatprep.subr.mxu0 0.0
    %576 = vmatpush1.msra.mxu0 %v348
    %577 = vmatprep.subr.mxu0 0.0
    %578 = vmatpush1.msra.mxu0 %v349
    %579 = vmatprep.subr.mxu0 0.0
    %580 = vmatpush1.msra.mxu0 %v350
    %581 = vmatprep.subr.mxu0 0.0
    %582 = vmatpush1.msra.mxu0 %v351
    %583 = vmatprep.subr.mxu0 0.0
    %584 = vmatpush1.msra.mxu0 %v352
    %585 = vmatprep.subr.mxu0 0.0
    %586 = vmatpush1.msra.mxu0 %v353
    %587 = vmatprep.subr.mxu0 0.0
    %588 = vmatpush1.msra.mxu0 %v354
    %589 = vmatprep.subr.mxu0 0.0
    %590 = vmatpush1.msra.mxu0 %v355
    %591 = vmatprep.subr.mxu0 0.0
    %592 = vmatpush1.msra.mxu0 %v356
    %593 = vmatprep.subr.mxu0 0.0
    %594 = vmatpush1.msra.mxu0 %v357
    %595 = vmatprep.subr.mxu0 0.0
    %596 = vmatpush1.msra.mxu0 %v358
    %597 = vmatprep.subr.mxu0 0.0
    %598 = vmatpush1.msra.mxu0 %v359
    %599 = vmatprep.subr.mxu0 0.0
    %600 = vmatpush1.msra.mxu0 %v360
    %601 = vmatprep.subr.mxu0 0.0
    %602 = vmatpush1.msra.mxu0 %v361
    %603 = vmatprep.subr.mxu0 0.0
    %604 = vmatpush1.msra.mxu0 %v362
    %605 = vmatprep.subr.mxu0 0.0
    %606 = vmatpush1.msra.mxu0 %v363
    %607 = vmatprep.subr.mxu0 0.0
    %608 = vmatpush1.msra.mxu0 %v364
    %609 = vmatprep.mubr.f32.mxu0 %v398
    %610 = vmatmul.mubr.f32.gmra.mrb[0].mxu0 %v397
    %v611 = vpop.f32.mrb[0].mxu0
    %v612 = vadd.f32 %v542, %v611
    %v613 = vpop.f32.mrb[0].mxu0
    %614 = vdwg.mxu0
    %615 = vst [vmem:[#allocation10] sm:$0x3] %v612
    // Predicated region
    $region38: #{tpu_custom_call.1} parent=1 // pred_check
      _
    $region39: #{tpu_custom_call.1} parent=1 // pred_check_branch
      %617 = sbr.rel (0) target = $region41
    $region40: #{tpu_custom_call.1} parent=1 // pred_region
      %s619 = ssub.s32 32, 32
      %620 = vsyncadd [#allocation4], %s619
      %s622 = sshll.u32 [#allocation10], 4
      %s623 = int_to_ptr.vmem [resolvable:$true] %s622
      %625 = dma.vmem_to_hbm [thread:$0]  %s623, 32, %s5, [#allocation4]
    $region41: #{tpu_custom_call.1} parent=1 // pred_fallthru
      _
    // Predicated region
    $region42: #{tpu_custom_call.1} parent=1 // pred_check
      _
    $region43: #{tpu_custom_call.1} parent=1 // pred_check_branch
      %627 = sbr.rel (0) target = $region45
    $region44: #{tpu_custom_call.1} parent=1 // pred_region
      %628 = dma.done [#allocation4], 32
    $region45: #{tpu_custom_call.1} parent=1 // pred_fallthru
      _
    %629 = vsyncpa [#allocation3], 1
    %630 = vsyncpa [#allocation6], 1
    %631 = vsyncpa [#allocation9], 1
    %632 = vsyncpa [#allocation4], 1

</llo_original>
